<compile_context>
chip_gen: v6e
topology: v6e:2x2x1
jax: 0.10.0
libtpu: 0.0.40
codegen_flags: <defaults>
</compile_context>

<pallas_src>
import functools

import jax
import jax.numpy as jnp
from jax.experimental import pallas as pl
from jax.experimental.pallas import tpu as pltpu

HIDDEN = 256
BATCH_TILE = 256   # rows per MXU pass once batch grows (v6e-friendly; v5e runs it as 2 K-passes)


def _round_up(x, m):
    return ((x + m - 1) // m) * m


def _bucket_batch(b):
    """Pad batch to a small set of buckets to avoid per-batch-size recompiles."""
    for c in (8, 32, 128, 512, 1024):
        if b <= c:
            return c
    return _round_up(b, 1024)


def _dueldqn_kernel(n_actions, x_ref, w1b_ref, wh_ref, bh_ref, q_ref):
    """Fused DuelDQN forward for one batch tile.

    Shapes:
      x_ref  : [bt, F]      (F = true in_features, NOT padded to 128)
      w1b_ref: [F+1, 256]   rows [0:F] = layer-1 weights, row F = layer-1 bias (f32)
      wh_ref : [256, Ap]    bf16 fused heads: lanes [0:A] = adv columns,
                            lane A = (wv - mean_a wa[:,a]) (folded dueling column),
                            remaining lanes zero
      bh_ref : [1, Ap]      f32: lanes [0:A] = ba, lane A = bv - mean(ba), rest zero
      q_ref  : [bt, Ap]     lane-dense output; wrapper slices to [B, A]
    """
    x = x_ref[...].astype(jnp.float32)            # x.float()
    in_features = x.shape[1]

    # Layer 1 on the VPU (f32): in_features is tiny (2 for MountainCar), so a
    # couple of broadcast FMAs beat a zero-padded K=128 MXU pass.
    h = w1b_ref[in_features:in_features + 1, :]   # bias row [1, 256]
    for i in range(in_features):                  # static unroll
        h = h + x[:, i:i + 1] * w1b_ref[i:i + 1, :]
    h = jnp.maximum(h, 0.0)                       # relu -> [bt, 256]
    # TODO(synk): if in_features ever grows beyond ~16, switch layer 1 back to
    # an MXU dot with K padded to the dtype tile instead of unrolled broadcasts.

    # One MXU pass for both heads (bf16 operands, f32 accumulate). Bias kept f32.
    heads = jnp.dot(h.astype(jnp.bfloat16), wh_ref[...],
                    preferred_element_type=jnp.float32) + bh_ref[...]

    # Folded dueling combine: lane A of `heads` already equals val - mean(adv),
    # so q_a = heads_a + c. Extract c with a one-hot lane mask + row-sum.
    lane = jax.lax.broadcasted_iota(jnp.int32, heads.shape, 1)
    c = jnp.sum(jnp.where(lane == n_actions, heads, 0.0), axis=-1, keepdims=True)
    # Lanes >= n_actions hold don't-care values; sliced off by the wrapper.
    q_ref[...] = heads + c


def prepare_params(params, n_actions):
    """One-time packing of the PyTorch-style weights into the kernel layout."""
    w1, b1, wa, ba, wv, bv = params               # [F,256],[256],[256,A],[A],[256,1],[1]
    A = n_actions
    Ap = _round_up(A + 1, 128)                    # adv lanes + 1 folded lane -> lane width
    f32 = jnp.float32

    # Layer 1: weights + bias fused into one [F+1, 256] f32 buffer (one DMA).
    w1b = jnp.concatenate(
        [w1.astype(f32), b1.astype(f32).reshape(1, HIDDEN)], axis=0)

    wa_f = wa.astype(f32)
    ba_f = ba.astype(f32).reshape(A)
    wv_f = wv.astype(f32).reshape(HIDDEN)
    bv_f = bv.astype(f32).reshape(())

    # Fused heads with the dueling combine folded into column A:
    #   heads[:, A] = h @ (wv - mean_a wa[:,a]) + (bv - mean(ba)) = val - mean(adv)
    wh = jnp.zeros((HIDDEN, Ap), f32)
    wh = wh.at[:, :A].set(wa_f)
    wh = wh.at[:, A].set(wv_f - wa_f.mean(axis=1))
    wh = wh.astype(jnp.bfloat16)                  # halves the dominant weight DMA

    bh = jnp.zeros((1, Ap), f32)
    bh = bh.at[0, :A].set(ba_f)
    bh = bh.at[0, A].set(bv_f - ba_f.mean())
    return (w1b, wh, bh)


@functools.partial(jax.jit, static_argnums=(2,))
def dueldqn_forward(x, prepared, n_actions):
    """x: [B, in_features] (any float dtype). Returns [B, n_actions] float32."""
    w1b, wh, bh = prepared
    B, F = x.shape
    Ap = wh.shape[1]
    Bp = _bucket_batch(B)                         # bucketed sublane padding
    bt = min(Bp, BATCH_TILE)                      # rows per grid step

    if B != Bp:
        x_p = jnp.zeros((Bp, F), jnp.float32).at[:B, :].set(x.astype(jnp.float32))
    else:
        x_p = x.astype(jnp.float32)

    q_pad = pl.pallas_call(
        functools.partial(_dueldqn_kernel, n_actions),
        out_shape=jax.ShapeDtypeStruct((Bp, Ap), jnp.float32),
        grid=(Bp // bt,),
        in_specs=[
            pl.BlockSpec((bt, F), lambda i: (i, 0)),           # x: tiled over batch
            pl.BlockSpec((F + 1, HIDDEN), lambda i: (0, 0)),   # weights: VMEM-resident
            pl.BlockSpec((HIDDEN, Ap), lambda i: (0, 0)),
            pl.BlockSpec((1, Ap), lambda i: (0, 0)),
        ],
        out_specs=pl.BlockSpec((bt, Ap), lambda i: (i, 0)),
        compiler_params=pltpu.CompilerParams(
            dimension_semantics=("parallel",)),                # both TCs on v7x
    )(x_p, w1b, wh, bh)
    return q_pad[:B, :n_actions]


def init_params(key, in_features, n_actions):
    """Deterministic init mimicking PyTorch nn.Linear default (U(-1/sqrt(fan_in), +))."""
    ks = jax.random.split(key, 6)

    def lin(kw, kb, fan_in, fan_out):
        bound = 1.0 / jnp.sqrt(fan_in)
        w = jax.random.uniform(kw, (fan_in, fan_out), jnp.float32, -bound, bound)
        b = jax.random.uniform(kb, (fan_out,), jnp.float32, -bound, bound)
        return w, b

    w1, b1 = lin(ks[0], ks[1], in_features, HIDDEN)
    wa, ba = lin(ks[2], ks[3], HIDDEN, n_actions)
    wv, bv = lin(ks[4], ks[5], HIDDEN, 1)
    return (w1, b1, wa, ba, wv, bv)


def dueldqn_reference(x, params, n_actions):
    """Pure-JAX reference mirroring the PyTorch forward (full f32)."""
    w1, b1, wa, ba, wv, bv = params
    h = jnp.maximum(x.astype(jnp.float32) @ w1 + b1, 0.0)
    val = h @ wv + bv                     # [B, 1]
    adv = h @ wa + ba                     # [B, A]
    return val + (adv - adv.mean(axis=-1, keepdims=True))


if __name__ == "__main__":
    in_features = 2     # MountainCar observation dim
    n_actions = 3       # MountainCar action space

    key = jax.random.PRNGKey(0)
    kx, kx2, kp = jax.random.split(key, 3)
    params = init_params(kp, in_features, n_actions)
    prepared = prepare_params(params, n_actions)   # one-time weight packing

    # bf16 head weights -> ~1e-2-class numerics vs. the f32 reference.
    TOL = dict(atol=2e-2, rtol=2e-2)

    # Small play-time batch (bucket 8, single grid step).
    batch = 2
    x = jax.random.normal(kx, (batch, in_features), jnp.float32)
    q = jax.block_until_ready(dueldqn_forward(x, prepared, n_actions))
    q_ref = dueldqn_reference(x, params, n_actions)
    assert q.shape == (batch, n_actions)
    assert jnp.allclose(q, q_ref, **TOL), (
        "small-batch mismatch", float(jnp.max(jnp.abs(q - q_ref))))

    # Batched evaluation path (bucket 512 -> 2 parallel grid steps of 256 rows).
    batch2 = 300
    x2 = jax.random.normal(kx2, (batch2, in_features), jnp.float32)
    q2 = jax.block_until_ready(dueldqn_forward(x2, prepared, n_actions))
    q2_ref = dueldqn_reference(x2, params, n_actions)
    assert q2.shape == (batch2, n_actions)
    assert jnp.allclose(q2, q2_ref, **TOL), (
        "batched mismatch", float(jnp.max(jnp.abs(q2 - q2_ref))))

    print("KERNEL_OK")
</pallas_src>

<mosaic_0001>
module attributes {stable_mosaic.version = 11 : i64} {
  func.func @_dueldqn_kernel(%arg0: i32, %arg1: memref<8x2xf32, #tpu.memory_space<vmem>>, %arg2: memref<3x256xf32, #tpu.memory_space<vmem>>, %arg3: memref<256x128xbf16, #tpu.memory_space<vmem>>, %arg4: memref<1x128xf32, #tpu.memory_space<vmem>>, %arg5: memref<8x128xf32, #tpu.memory_space<vmem>>) attributes {dimension_semantics = [#tpu.dimension_semantics<parallel>], iteration_bounds = array<i64: 1>, scalar_prefetch = 0 : i64, scratch_operands = 0 : i64, tpu.core_type = #tpu.core_type<tc>, window_params = [{transform_indices = @transform_0, window_bounds = array<i64: 8, 2>}, {pipeline_mode = #tpu.pipeline_mode<synchronous>, transform_indices = @transform_1, window_bounds = array<i64: 3, 256>}, {pipeline_mode = #tpu.pipeline_mode<synchronous>, transform_indices = @transform_2, window_bounds = array<i64: 256, 128>}, {pipeline_mode = #tpu.pipeline_mode<synchronous>, transform_indices = @transform_3, window_bounds = array<i64: 1, 128>}, {transform_indices = @transform_4, window_bounds = array<i64: 8, 128>}]} {
    %c0 = arith.constant 0 : index
    %c0_0 = arith.constant 0 : index
    %0 = vector.load %arg1[%c0, %c0_0] : memref<8x2xf32, #tpu.memory_space<vmem>>, vector<8x2xf32>
    %c2 = arith.constant 2 : index
    %c0_1 = arith.constant 0 : index
    %1 = vector.load %arg2[%c2, %c0_1] : memref<3x256xf32, #tpu.memory_space<vmem>>, vector<1x256xf32>
    %2 = vector.extract_strided_slice %0 {offsets = [0, 0], sizes = [8, 1], strides = [1, 1]} : vector<8x2xf32> to vector<8x1xf32>
    %c0_2 = arith.constant 0 : index
    %c0_3 = arith.constant 0 : index
    %3 = vector.load %arg2[%c0_2, %c0_3] : memref<3x256xf32, #tpu.memory_space<vmem>>, vector<1x256xf32>
    %4 = vector.broadcast %2 : vector<8x1xf32> to vector<8x256xf32>
    %5 = vector.broadcast %3 : vector<1x256xf32> to vector<8x256xf32>
    %6 = arith.mulf %4, %5 : vector<8x256xf32>
    %7 = vector.broadcast %1 : vector<1x256xf32> to vector<8x256xf32>
    %8 = arith.addf %7, %6 : vector<8x256xf32>
    %9 = vector.extract_strided_slice %0 {offsets = [0, 1], sizes = [8, 1], strides = [1, 1]} : vector<8x2xf32> to vector<8x1xf32>
    %c1 = arith.constant 1 : index
    %c0_4 = arith.constant 0 : index
    %10 = vector.load %arg2[%c1, %c0_4] : memref<3x256xf32, #tpu.memory_space<vmem>>, vector<1x256xf32>
    %11 = vector.broadcast %9 : vector<8x1xf32> to vector<8x256xf32>
    %12 = vector.broadcast %10 : vector<1x256xf32> to vector<8x256xf32>
    %13 = arith.mulf %11, %12 : vector<8x256xf32>
    %14 = arith.addf %8, %13 : vector<8x256xf32>
    %cst = arith.constant 0.000000e+00 : f32
    %15 = vector.broadcast %cst : f32 to vector<8x256xf32>
    %16 = arith.maximumf %14, %15 : vector<8x256xf32>
    %17 = arith.truncf %16 : vector<8x256xf32> to vector<8x256xbf16>
    %c0_5 = arith.constant 0 : index
    %c0_6 = arith.constant 0 : index
    %18 = vector.load %arg3[%c0_5, %c0_6] : memref<256x128xbf16, #tpu.memory_space<vmem>>, vector<256x128xbf16>
    %cst_7 = arith.constant dense<0.000000e+00> : vector<8x128xf32>
    %19 = tpu.matmul %17, %18, %cst_7 {dimension_numbers = #tpu.dot_dimension_numbers<[1], [0], [0], [1], [0, 0, 1, 1], [], []>} : vector<8x256xbf16>, vector<256x128xbf16>, vector<8x128xf32> -> vector<8x128xf32>
    %c0_8 = arith.constant 0 : index
    %c0_9 = arith.constant 0 : index
    %20 = vector.load %arg4[%c0_8, %c0_9] : memref<1x128xf32, #tpu.memory_space<vmem>>, vector<1x128xf32>
    %21 = vector.broadcast %20 : vector<1x128xf32> to vector<8x128xf32>
    %22 = arith.addf %19, %21 : vector<8x128xf32>
    %23 = tpu.iota {dimensions = array<i32: 1>} : vector<8x128xi32>
    %c3_i32 = arith.constant 3 : i32
    %24 = vector.broadcast %c3_i32 : i32 to vector<8x128xi32>
    %25 = arith.cmpi eq, %23, %24 : vector<8x128xi32>
    %cst_10 = arith.constant 0.000000e+00 : f32
    %26 = vector.broadcast %cst_10 : f32 to vector<8x128xf32>
    %27 = arith.select %25, %22, %26 : vector<8x128xi1>, vector<8x128xf32>
    %cst_11 = arith.constant dense<0.000000e+00> : vector<8xf32>
    %28 = vector.multi_reduction <add>, %27, %cst_11 [1] : vector<8x128xf32> to vector<8xf32>
    %29 = vector.shape_cast %28 : vector<8xf32> to vector<8x1xf32>
    %30 = vector.broadcast %29 : vector<8x1xf32> to vector<8x128xf32>
    %31 = arith.addf %22, %30 : vector<8x128xf32>
    %c0_12 = arith.constant 0 : index
    %c0_13 = arith.constant 0 : index
    %32 = vector.load %arg5[%c0_12, %c0_13] : memref<8x128xf32, #tpu.memory_space<vmem>>, vector<8x128xf32>
    tpu.vector_store %arg5[%c0_12, %c0_13], %31 {strides = array<i32>} : memref<8x128xf32, #tpu.memory_space<vmem>>, vector<8x128xf32>,
    return
  }
  func.func @transform_0(%arg0: i32) -> (i32, i32) {
    %c0_i32 = arith.constant 0 : i32
    %c0_i32_0 = arith.constant 0 : i32
    return %arg0, %c0_i32 : i32, i32
  }
  func.func @transform_1(%arg0: i32) -> (i32, i32) {
    %c0_i32 = arith.constant 0 : i32
    %c0_i32_0 = arith.constant 0 : i32
    %c0_i32_1 = arith.constant 0 : i32
    return %c0_i32, %c0_i32_0 : i32, i32
  }
  func.func @transform_2(%arg0: i32) -> (i32, i32) {
    %c0_i32 = arith.constant 0 : i32
    %c0_i32_0 = arith.constant 0 : i32
    %c0_i32_1 = arith.constant 0 : i32
    return %c0_i32, %c0_i32_0 : i32, i32
  }
  func.func @transform_3(%arg0: i32) -> (i32, i32) {
    %c0_i32 = arith.constant 0 : i32
    %c0_i32_0 = arith.constant 0 : i32
    %c0_i32_1 = arith.constant 0 : i32
    return %c0_i32, %c0_i32_0 : i32, i32
  }
  func.func @transform_4(%arg0: i32) -> (i32, i32) {
    %c0_i32 = arith.constant 0 : i32
    %c0_i32_0 = arith.constant 0 : i32
    return %arg0, %c0_i32 : i32, i32
  }
}

</mosaic_0001>

<llo_original>
// kernel: dueldqn_forward.1
$region0: #{dueldqn_forward.1}
  #allocation0 [shape = 'u32[]', space=smem, size = 0x4, offset = 0x4, fixed_abs, tag = 'smem constant byte address 0x4 - core index']
  #allocation1 [shape = 'u32[144,128]{1,0:T(1,128)}', space=vmem, size = 0x12000, scoped, tag = 'internal scratch']
  %s0 = inlined_call_operand.vmem [shape: f32[8,2], index: 0, kind: input, shape index: {}]
  %s1 = inlined_call_operand.vmem [shape: f32[3,256], index: 1, kind: input, shape index: {}]
  %s2 = inlined_call_operand.hbm [shape: bf16[256,128], index: 2, kind: input, shape index: {}]
  %s3 = inlined_call_operand.vmem [shape: f32[1,128], index: 3, kind: input, shape index: {}]
  %s4 = inlined_call_operand.vmem [shape: f32[8,128], index: 4, kind: output, shape index: {}]
  %s5 = sld [smem:[#allocation0]]
  $region30: #{dueldqn_forward.1} parent=0
    _
  %s7 = ssub.s32 1, %s5
  %s8 = scalar_select 0, %s7, %s5
  $region1: #{dueldqn_forward.1} parent=0
    #allocation2 [shape = 'u8[65536]{0}', space=vmem, size = 0x10000, scoped, tag = 'input window, operand 2, single buffered']
    #allocation3 [shape = 's32[1]{0}', space=sflag, size = 0x4, scoped, tag = 'scoped memory for dueldqn_forward.1']
    %9 = vsyncpa [#allocation3], 0
    // Predicated region
    $region2: #{dueldqn_forward.1} parent=1 // pred_check
      _
    $region3: #{dueldqn_forward.1} parent=1 // pred_check_branch
      %11 = sbr.rel (0) target = $region5
    $region4: #{dueldqn_forward.1} parent=1 // pred_region
      _
    $region5: #{dueldqn_forward.1} parent=1 // pred_fallthru
      _
    // Predicated region
    $region6: #{dueldqn_forward.1} parent=1 // pred_check
      _
    $region7: #{dueldqn_forward.1} parent=1 // pred_check_branch
      %13 = sbr.rel (0) target = $region9
    $region8: #{dueldqn_forward.1} parent=1 // pred_region
      _
    $region9: #{dueldqn_forward.1} parent=1 // pred_fallthru
      _
    // Predicated region
    $region10: #{dueldqn_forward.1} parent=1 // pred_check
      _
    $region11: #{dueldqn_forward.1} parent=1 // pred_check_branch
      %15 = sbr.rel (0) target = $region13
    $region12: #{dueldqn_forward.1} parent=1 // pred_region
      %s17 = ssub.s32 2048, 2048
      %18 = vsyncadd [#allocation3], %s17
      %s19 = sshll.u32 [#allocation2], 4
      %s20 = int_to_ptr.vmem [resolvable:$true] %s19
      %25 = dma.hbm_to_vmem [thread:$0]  %s2, 2048, %s20, [#allocation3], 64, 64, 4
    $region13: #{dueldqn_forward.1} parent=1 // pred_fallthru
      _
    // Predicated region
    $region14: #{dueldqn_forward.1} parent=1 // pred_check
      _
    $region15: #{dueldqn_forward.1} parent=1 // pred_check_branch
      %27 = sbr.rel (0) target = $region17
    $region16: #{dueldqn_forward.1} parent=1 // pred_region
      _
    $region17: #{dueldqn_forward.1} parent=1 // pred_fallthru
      _
    // Predicated region
    $region18: #{dueldqn_forward.1} parent=1 // pred_check
      _
    $region19: #{dueldqn_forward.1} parent=1 // pred_check_branch
      %29 = sbr.rel (0) target = $region21
    $region20: #{dueldqn_forward.1} parent=1 // pred_region
      %30 = dma.done [#allocation3], 2048
    $region21: #{dueldqn_forward.1} parent=1 // pred_fallthru
      _
    %v32 = vld [vmem:[%s0] sm:$0xff]
    %s33 = scalar_lea.vmem %s1, 2
    %v34 = vld [vmem:[%s33] ss:$4 sm:$0x3]
    %v35 = vld [vmem:[%s1] ss:$4 sm:$0x3]
    %37 = vset.pattern.permute.xlu0 0
    %38 = vperm.xlu0 %37, %v32
    %v39 = vpop.permute.xlu0 %38
    %v42 = vlaneseq
    %v43 = vshrl.u32 %v42, 7
    %v44 = vsub.s32 0, %v43
    %v45 = vrot.slane %v35, %v44
    %v46 = vlaneseq
    %v47 = vshrl.u32 %v46, 7
    %v48 = vsub.s32 1, %v47
    %v49 = vrot.slane %v35, %v48
    %v52 = vmul.f32 %v39, %v45
    %v53 = vmul.f32 %v39, %v49
    %v55 = vlaneseq
    %v56 = vshrl.u32 %v55, 7
    %v57 = vsub.s32 0, %v56
    %v58 = vrot.slane %v34, %v57
    %v59 = vlaneseq
    %v60 = vshrl.u32 %v59, 7
    %v61 = vsub.s32 1, %v60
    %v62 = vrot.slane %v34, %v61
    %v65 = vadd.f32 %v58, %v52
    %v66 = vadd.f32 %v62, %v53
    %s67 = scalar_lea.vmem %s1, 1
    %v68 = vld [vmem:[%s67] ss:$4 sm:$0x3]
    %69 = vset.pattern.permute.xlu0 1
    %70 = vperm.xlu0 %69, %v32
    %v71 = vpop.permute.xlu0 %70
    %v74 = vlaneseq
    %v75 = vshrl.u32 %v74, 7
    %v76 = vsub.s32 0, %v75
    %v77 = vrot.slane %v68, %v76
    %v78 = vlaneseq
    %v79 = vshrl.u32 %v78, 7
    %v80 = vsub.s32 1, %v79
    %v81 = vrot.slane %v68, %v80
    %v84 = vmul.f32 %v71, %v77
    %v85 = vmul.f32 %v71, %v81
    %v86 = vadd.f32 %v65, %v84
    %v87 = vadd.f32 %v66, %v85
    %v88 = vmax.f32 %v86, 0.0
    %v89 = vmax.f32 %v87, 0.0
    %v90 = vpack.c.bf16 %v88, %v88
    %v91 = vpack.c.bf16 %v89, %v89
    %v92 = vld [vmem:[#allocation2] sm:$0xf]
    %v93 = vld [vmem:[#allocation2 + $0x4] sm:$0xf]
    %v94 = vld [vmem:[#allocation2 + $0x8] sm:$0xf]
    %v95 = vld [vmem:[#allocation2 + $0xc] sm:$0xf]
    %v96 = vld [vmem:[#allocation2 + $0x10] sm:$0xf]
    %v97 = vld [vmem:[#allocation2 + $0x14] sm:$0xf]
    %v98 = vld [vmem:[#allocation2 + $0x18] sm:$0xf]
    %v99 = vld [vmem:[#allocation2 + $0x1c] sm:$0xf]
    %v100 = vld [vmem:[#allocation2 + $0x20] sm:$0xf]
    %v101 = vld [vmem:[#allocation2 + $0x24] sm:$0xf]
    %v102 = vld [vmem:[#allocation2 + $0x28] sm:$0xf]
    %v103 = vld [vmem:[#allocation2 + $0x2c] sm:$0xf]
    %v104 = vld [vmem:[#allocation2 + $0x30] sm:$0xf]
    %v105 = vld [vmem:[#allocation2 + $0x34] sm:$0xf]
    %v106 = vld [vmem:[#allocation2 + $0x38] sm:$0xf]
    %v107 = vld [vmem:[#allocation2 + $0x3c] sm:$0xf]
    %v108 = vld [vmem:[#allocation2 + $0x40] sm:$0xf]
    %v109 = vld [vmem:[#allocation2 + $0x44] sm:$0xf]
    %v110 = vld [vmem:[#allocation2 + $0x48] sm:$0xf]
    %v111 = vld [vmem:[#allocation2 + $0x4c] sm:$0xf]
    %v112 = vld [vmem:[#allocation2 + $0x50] sm:$0xf]
    %v113 = vld [vmem:[#allocation2 + $0x54] sm:$0xf]
    %v114 = vld [vmem:[#allocation2 + $0x58] sm:$0xf]
    %v115 = vld [vmem:[#allocation2 + $0x5c] sm:$0xf]
    %v116 = vld [vmem:[#allocation2 + $0x60] sm:$0xf]
    %v117 = vld [vmem:[#allocation2 + $0x64] sm:$0xf]
    %v118 = vld [vmem:[#allocation2 + $0x68] sm:$0xf]
    %v119 = vld [vmem:[#allocation2 + $0x6c] sm:$0xf]
    %v120 = vld [vmem:[#allocation2 + $0x70] sm:$0xf]
    %v121 = vld [vmem:[#allocation2 + $0x74] sm:$0xf]
    %v122 = vld [vmem:[#allocation2 + $0x78] sm:$0xf]
    %v123 = vld [vmem:[#allocation2 + $0x7c] sm:$0xf]
    %v124 = vld [vmem:[%s3] sm:$0x1]
    %v126 = vlaneseq
    %v127 = vshrl.u32 %v126, 7
    %v128 = vsub.s32 0, %v127
    %v129 = vrot.slane %v124, %v128
    %v163 = vunpack.c.l.b16 %v92
    %v164 = vunpack.c.l.b16 %v93
    %v165 = vunpack.c.l.b16 %v94
    %v166 = vunpack.c.l.b16 %v95
    %v167 = vunpack.c.l.b16 %v96
    %v168 = vunpack.c.l.b16 %v97
    %v169 = vunpack.c.l.b16 %v98
    %v170 = vunpack.c.l.b16 %v99
    %v171 = vunpack.c.l.b16 %v100
    %v172 = vunpack.c.l.b16 %v101
    %v173 = vunpack.c.l.b16 %v102
    %v174 = vunpack.c.l.b16 %v103
    %v175 = vunpack.c.l.b16 %v104
    %v176 = vunpack.c.l.b16 %v105
    %v177 = vunpack.c.l.b16 %v106
    %v178 = vunpack.c.l.b16 %v107
    %v179 = vunpack.c.l.b16 %v108
    %v180 = vunpack.c.l.b16 %v109
    %v181 = vunpack.c.l.b16 %v110
    %v182 = vunpack.c.l.b16 %v111
    %v183 = vunpack.c.l.b16 %v112
    %v184 = vunpack.c.l.b16 %v113
    %v185 = vunpack.c.l.b16 %v114
    %v186 = vunpack.c.l.b16 %v115
    %v187 = vunpack.c.l.b16 %v116
    %v188 = vunpack.c.l.b16 %v117
    %v189 = vunpack.c.l.b16 %v118
    %v190 = vunpack.c.l.b16 %v119
    %v191 = vunpack.c.l.b16 %v120
    %v192 = vunpack.c.l.b16 %v121
    %v193 = vunpack.c.l.b16 %v122
    %v194 = vunpack.c.l.b16 %v123
    %v195 = vpack.c.b16 %v164, %v163
    %v196 = vpack.c.b16 %v166, %v165
    %v197 = vpack.c.b16 %v168, %v167
    %v198 = vpack.c.b16 %v170, %v169
    %v199 = vpack.c.b16 %v172, %v171
    %v200 = vpack.c.b16 %v174, %v173
    %v201 = vpack.c.b16 %v176, %v175
    %v202 = vpack.c.b16 %v178, %v177
    %v203 = vpack.c.b16 %v180, %v179
    %v204 = vpack.c.b16 %v182, %v181
    %v205 = vpack.c.b16 %v184, %v183
    %v206 = vpack.c.b16 %v186, %v185
    %v207 = vpack.c.b16 %v188, %v187
    %v208 = vpack.c.b16 %v190, %v189
    %v209 = vpack.c.b16 %v192, %v191
    %v210 = vpack.c.b16 %v194, %v193
    %227 = vmatprep.subr.bf16.mxu0 0
    %228 = vmatpush1.bf16.msra.mxu0 %v202
    %229 = vmatprep.subr.bf16.mxu0 0
    %230 = vmatpush1.bf16.msra.mxu0 %v201
    %231 = vmatprep.subr.bf16.mxu0 0
    %232 = vmatpush1.bf16.msra.mxu0 %v200
    %233 = vmatprep.subr.bf16.mxu0 0
    %234 = vmatpush1.bf16.msra.mxu0 %v199
    %235 = vmatprep.subr.bf16.mxu0 0
    %236 = vmatpush1.bf16.msra.mxu0 %v198
    %237 = vmatprep.subr.bf16.mxu0 0
    %238 = vmatpush1.bf16.msra.mxu0 %v197
    %239 = vmatprep.subr.bf16.mxu0 0
    %240 = vmatpush1.bf16.msra.mxu0 %v196
    %241 = vmatprep.subr.bf16.mxu0 0
    %242 = vmatpush1.bf16.msra.mxu0 %v195
    %243 = vmatprep.subr.bf16.mxu0 0
    %244 = vmatpush2.bf16.msra.mxu0 %v210
    %245 = vmatprep.subr.bf16.mxu0 0
    %246 = vmatpush2.bf16.msra.mxu0 %v209
    %247 = vmatprep.subr.bf16.mxu0 0
    %248 = vmatpush2.bf16.msra.mxu0 %v208
    %249 = vmatprep.subr.bf16.mxu0 0
    %250 = vmatpush2.bf16.msra.mxu0 %v207
    %251 = vmatprep.subr.bf16.mxu0 0
    %252 = vmatpush2.bf16.msra.mxu0 %v206
    %253 = vmatprep.subr.bf16.mxu0 0
    %254 = vmatpush2.bf16.msra.mxu0 %v205
    %255 = vmatprep.subr.bf16.mxu0 0
    %256 = vmatpush2.bf16.msra.mxu0 %v204
    %257 = vmatprep.subr.bf16.mxu0 0
    %258 = vmatpush2.bf16.msra.mxu0 %v203
    %259 = vmatprep.mubr.bf16.mxu0 %v91
    %260 = vmatmul.mubr.bf16.gmra.mxu0 %v90
    %v261 = vpop.f32.mrf.mxu0
    %v262 = vadd.f32 %v129, %v261
    %v263 = vpop.f32.mrf.mxu0
    %v264 = vpop.f32.mrf.mxu0
    %v265 = vpop.f32.mrf.mxu0
    %266 = vdwg.mxu0
    %v267 = vlaneseq
    %v268 = vand.u32 %v267, 127
    %vm269 = vcmp.eq.s32.totalorder %v268, 3
    %v270 = vsel %vm269, %v262, 0.0
    %271 = vadd.xlane.f32.xlu0 %v270
    %v272 = vpop.xlane.xlu0 %271
    %v273 = vadd.f32 %v262, %v272
    %274 = vst [vmem:[%s4] sm:$0xff] %v273
    // Predicated region
    $region22: #{dueldqn_forward.1} parent=1 // pred_check
      _
    $region23: #{dueldqn_forward.1} parent=1 // pred_check_branch
      %276 = sbr.rel (0) target = $region25
    $region24: #{dueldqn_forward.1} parent=1 // pred_region
      _
    $region25: #{dueldqn_forward.1} parent=1 // pred_fallthru
      _
    // Predicated region
    $region26: #{dueldqn_forward.1} parent=1 // pred_check
      _
    $region27: #{dueldqn_forward.1} parent=1 // pred_check_branch
      %278 = sbr.rel (0) target = $region29
    $region28: #{dueldqn_forward.1} parent=1 // pred_region
      _
    $region29: #{dueldqn_forward.1} parent=1 // pred_fallthru
      _
    %279 = vsyncpa [#allocation3], 1

</llo_original>
